<compile_context>
chip_gen: v7x
topology: tpu7x:2x2x1
jax: 0.10.0
libtpu: 0.0.40
codegen_flags: <defaults>
</compile_context>

<pallas_src>
import jax
import jax.numpy as jnp
from jax.experimental import pallas as pl
from jax.experimental.pallas import tpu as pltpu


def _upconv_kernel(x_ref, w_ref, b_ref, a_ref, o_ref):
    # x_ref: (Cin, TS)   spatial tile, lanes = spatial positions
    # w_ref: (NC, Cin)   reshaped+transposed ConvTranspose3d weight (NC = Cout*8)
    # b_ref: (NC, 1)     bias repeated over the 2x2x2 kernel positions
    # a_ref: (NC, 1)     PReLU alpha repeated the same way
    # o_ref: (NC, TS)
    acc = jnp.dot(w_ref[...], x_ref[...], preferred_element_type=jnp.float32)
    z = acc + b_ref[...]
    y = jnp.where(z > 0, z, a_ref[...] * z)
    o_ref[...] = y.astype(o_ref.dtype)


def upconv_pallas(x, weight, bias, alpha, *, ts=512,
                  vmem_limit_bytes=48 * 1024 * 1024):
    """ConvTranspose3d(Cin, Cout, 2, 2) + PReLU(Cout).

    x:      (N, Cin, D, H, W)  NCDHW (PyTorch layout)
    weight: (Cin, Cout, 2, 2, 2)
    bias, alpha: (Cout,)
    returns (N, Cout, 2D, 2H, 2W)
    """
    N, Cin, D, H, W = x.shape
    Cout = weight.shape[1]
    NC = Cout * 8
    S = D * H * W

    # Spatial tile: lane-dense (multiple of 128), no larger than padded S.
    ts = int(ts)
    ts = min(ts, ((S + 127) // 128) * 128)
    ts = max(128, (ts // 128) * 128)
    S_pad = ((S + ts - 1) // ts) * ts
    n_s = S_pad // ts

    # --- glue on the 8x-smaller input side (no transpose of x) ---
    x3 = x.reshape(N, Cin, S)                    # free reshape, native layout
    if S_pad != S:
        x3 = jnp.pad(x3, ((0, 0), (0, 0), (0, S_pad - S)))
    w_t = weight.reshape(Cin, NC).T              # (NC, Cin)
    b2 = jnp.repeat(bias, 8).reshape(NC, 1)      # row co*8+k -> bias[co]
    a2 = jnp.repeat(alpha, 8).reshape(NC, 1)     # row co*8+k -> alpha[co]

    cost = pl.CostEstimate(
        flops=2 * N * S_pad * Cin * NC,
        transcendentals=0,
        bytes_accessed=4 * (N * Cin * S_pad + Cin * NC + N * NC * S_pad),
    )

    out3 = pl.pallas_call(
        _upconv_kernel,
        out_shape=jax.ShapeDtypeStruct((N, NC, S_pad), x.dtype),
        grid_spec=pltpu.PrefetchScalarGridSpec(
            num_scalar_prefetch=0,
            grid=(N, n_s),
            in_specs=[
                pl.BlockSpec((None, Cin, ts), lambda n, s: (n, 0, s)),
                pl.BlockSpec((NC, Cin), lambda n, s: (0, 0)),
                pl.BlockSpec((NC, 1), lambda n, s: (0, 0)),
                pl.BlockSpec((NC, 1), lambda n, s: (0, 0)),
            ],
            out_specs=pl.BlockSpec((None, NC, ts), lambda n, s: (n, 0, s)),
        ),
        compiler_params=pltpu.CompilerParams(
            dimension_semantics=("parallel", "parallel"),
            vmem_limit_bytes=vmem_limit_bytes,
        ),
        cost_estimate=cost,
    )(x3, w_t, b2, a2)

    # --- glue: unpack the 2x2x2 kernel positions into the upsampled volume ---
    out3 = out3[:, :, :S]                                     # drop spatial pad
    out = out3.reshape(N, Cout, 2, 2, 2, D, H, W)             # (n,co,kd,kh,kw,d,h,w)
    out = jnp.transpose(out, (0, 1, 5, 2, 6, 3, 7, 4))        # (n,co,d,kd,h,kh,w,kw)
    return out.reshape(N, Cout, 2 * D, 2 * H, 2 * W)


if __name__ == "__main__":
    key = jax.random.PRNGKey(0)
    kx, kw, kb = jax.random.split(key, 3)

    N, Cin, Cout = 2, 4, 8
    D = H = W = 8

    x = jax.random.normal(kx, (N, Cin, D, H, W), dtype=jnp.float32)
    # Shapes match nn.ConvTranspose3d(Cin, Cout, 2, 2) weight/bias + PReLU(Cout).
    weight = 0.1 * jax.random.normal(kw, (Cin, Cout, 2, 2, 2), dtype=jnp.float32)
    bias = 0.05 * jax.random.normal(kb, (Cout,), dtype=jnp.float32)
    alpha = jnp.full((Cout,), 0.25, dtype=jnp.float32)   # PReLU default init

    out = upconv_pallas(x, weight, bias, alpha)
    out = jax.block_until_ready(out)
    assert out.shape == (N, Cout, 2 * D, 2 * H, 2 * W), out.shape

    # Pure-JAX reference (non-overlapping stride-2/kernel-2 transposed conv).
    t = jnp.einsum("ncdhw,coijk->nodihjwk", x, weight,
                   precision=jax.lax.Precision.HIGHEST)
    ref = t.reshape(N, Cout, 2 * D, 2 * H, 2 * W) + bias[None, :, None, None, None]
    a5 = alpha[None, :, None, None, None]
    ref = jnp.where(ref > 0, ref, a5 * ref)
    err = float(jnp.max(jnp.abs(out - ref)))
    assert jnp.allclose(out, ref, atol=1e-3, rtol=1e-3), err

    print("KERNEL_OK")
</pallas_src>

<mosaic_0001>
module attributes {stable_mosaic.version = 11 : i64} {
  func.func @_upconv_kernel(%arg0: i32, %arg1: i32, %arg2: memref<1x4x512xf32, #tpu.memory_space<vmem>>, %arg3: memref<64x4xf32, #tpu.memory_space<vmem>>, %arg4: memref<64x1xf32, #tpu.memory_space<vmem>>, %arg5: memref<64x1xf32, #tpu.memory_space<vmem>>, %arg6: memref<1x64x512xf32, #tpu.memory_space<vmem>>) attributes {dimension_semantics = [#tpu.dimension_semantics<parallel>, #tpu.dimension_semantics<parallel>], iteration_bounds = array<i64: 2, 1>, scalar_prefetch = 0 : i64, scratch_operands = 0 : i64, tpu.core_type = #tpu.core_type<tc>, window_params = [{transform_indices = @transform_0, window_bounds = array<i64: 1, 4, 512>}, {pipeline_mode = #tpu.pipeline_mode<synchronous>, transform_indices = @transform_1, window_bounds = array<i64: 64, 4>}, {pipeline_mode = #tpu.pipeline_mode<synchronous>, transform_indices = @transform_2, window_bounds = array<i64: 64, 1>}, {pipeline_mode = #tpu.pipeline_mode<synchronous>, transform_indices = @transform_3, window_bounds = array<i64: 64, 1>}, {transform_indices = @transform_4, window_bounds = array<i64: 1, 64, 512>}]} {
    %c0 = arith.constant 0 : index
    %c0_0 = arith.constant 0 : index
    %0 = vector.load %arg3[%c0, %c0_0] : memref<64x4xf32, #tpu.memory_space<vmem>>, vector<64x4xf32>
    %c0_1 = arith.constant 0 : index
    %c0_2 = arith.constant 0 : index
    %c0_3 = arith.constant 0 : index
    %1 = vector.load %arg2[%c0_1, %c0_2, %c0_3] : memref<1x4x512xf32, #tpu.memory_space<vmem>>, vector<1x4x512xf32>
    %2 = vector.shape_cast %1 : vector<1x4x512xf32> to vector<4x512xf32>
    %cst = arith.constant dense<0.000000e+00> : vector<64x512xf32>
    %3 = tpu.matmul %0, %2, %cst {dimension_numbers = #tpu.dot_dimension_numbers<[1], [0], [0], [1], [0, 0, 1, 1], [], []>} : vector<64x4xf32>, vector<4x512xf32>, vector<64x512xf32> -> vector<64x512xf32>
    %c0_4 = arith.constant 0 : index
    %c0_5 = arith.constant 0 : index
    %4 = vector.load %arg4[%c0_4, %c0_5] : memref<64x1xf32, #tpu.memory_space<vmem>>, vector<64x1xf32>
    %5 = vector.broadcast %4 : vector<64x1xf32> to vector<64x512xf32>
    %6 = arith.addf %3, %5 : vector<64x512xf32>
    %cst_6 = arith.constant 0.000000e+00 : f32
    %7 = vector.broadcast %cst_6 : f32 to vector<64x512xf32>
    %8 = arith.cmpf ogt, %6, %7 : vector<64x512xf32>
    %c0_7 = arith.constant 0 : index
    %c0_8 = arith.constant 0 : index
    %9 = vector.load %arg5[%c0_7, %c0_8] : memref<64x1xf32, #tpu.memory_space<vmem>>, vector<64x1xf32>
    %10 = vector.broadcast %9 : vector<64x1xf32> to vector<64x512xf32>
    %11 = arith.mulf %10, %6 : vector<64x512xf32>
    %12 = arith.select %8, %6, %11 : vector<64x512xi1>, vector<64x512xf32>
    %c0_9 = arith.constant 0 : index
    %c0_10 = arith.constant 0 : index
    %c0_11 = arith.constant 0 : index
    %13 = vector.load %arg6[%c0_9, %c0_10, %c0_11] : memref<1x64x512xf32, #tpu.memory_space<vmem>>, vector<1x64x512xf32>
    %14 = vector.shape_cast %13 : vector<1x64x512xf32> to vector<64x512xf32>
    %15 = vector.shape_cast %12 : vector<64x512xf32> to vector<1x64x512xf32>
    tpu.vector_store %arg6[%c0_9, %c0_10, %c0_11], %15 {strides = array<i32>} : memref<1x64x512xf32, #tpu.memory_space<vmem>>, vector<1x64x512xf32>,
    return
  }
  func.func @transform_0(%arg0: i32, %arg1: i32) -> (i32, i32, i32) {
    %c0_i32 = arith.constant 0 : i32
    %c0_i32_0 = arith.constant 0 : i32
    return %arg0, %c0_i32, %arg1 : i32, i32, i32
  }
  func.func @transform_1(%arg0: i32, %arg1: i32) -> (i32, i32) {
    %c0_i32 = arith.constant 0 : i32
    %c0_i32_0 = arith.constant 0 : i32
    %c0_i32_1 = arith.constant 0 : i32
    return %c0_i32, %c0_i32_0 : i32, i32
  }
  func.func @transform_2(%arg0: i32, %arg1: i32) -> (i32, i32) {
    %c0_i32 = arith.constant 0 : i32
    %c0_i32_0 = arith.constant 0 : i32
    %c0_i32_1 = arith.constant 0 : i32
    return %c0_i32, %c0_i32_0 : i32, i32
  }
  func.func @transform_3(%arg0: i32, %arg1: i32) -> (i32, i32) {
    %c0_i32 = arith.constant 0 : i32
    %c0_i32_0 = arith.constant 0 : i32
    %c0_i32_1 = arith.constant 0 : i32
    return %c0_i32, %c0_i32_0 : i32, i32
  }
  func.func @transform_4(%arg0: i32, %arg1: i32) -> (i32, i32, i32) {
    %c0_i32 = arith.constant 0 : i32
    %c0_i32_0 = arith.constant 0 : i32
    return %arg0, %c0_i32, %arg1 : i32, i32, i32
  }
}

</mosaic_0001>

<llo_original>
// kernel: tpu_custom_call.1
$region0: #{tpu_custom_call.1}
  #allocation0 [shape = 'u32[]', space=smem, size = 0x4, offset = 0x4, fixed_abs, tag = 'smem constant byte address 0x4 - core index']
  #allocation1 [shape = 'u32[144,128]{1,0:T(1,128)}', space=vmem, size = 0x12000, scoped, tag = 'internal scratch']
  %s0 = inlined_call_operand.vmem [shape: f32[2,4,512], index: 0, kind: input, shape index: {}]
  %s1 = inlined_call_operand.vmem [shape: f32[64,4], index: 1, kind: input, shape index: {}]
  %s2 = inlined_call_operand.vmem [shape: f32[64,1], index: 2, kind: input, shape index: {}]
  %s3 = inlined_call_operand.vmem [shape: f32[64,1], index: 3, kind: input, shape index: {}]
  %s4 = inlined_call_operand.hbm [shape: f32[2,64,512], index: 4, kind: output, shape index: {}]
  %s5 = sld [smem:[#allocation0]]
  $region49: #{tpu_custom_call.1} parent=0
    _
  %s7 = ssub.s32 1, %s5
  %s8 = scalar_select 0, %s7, %s5
  $region1: #{tpu_custom_call.1} parent=0
    #allocation2 [shape = 'u8[262144]{0}', space=vmem, size = 0x40000, scoped, tag = 'output window, operand 0']
    #allocation3 [shape = 's32[2]{0}', space=sflag, size = 0x8, scoped, tag = 'scoped memory for tpu_custom_call.1']
    %9 = vsyncpa [#allocation3], 0
    %s10 = scalar_lea.sflag [#allocation3], 1
    %11 = vsyncpa %s10, 0
    loop: start=0, step=1, limit=4
    $region2: #{tpu_custom_call.1} parent=1 // loop_pre_header
      _
    $region3: #{tpu_custom_call.1} parent=1 // loop_header
      %s13 = sphi 0, %s17
      %p14 = scmp.ge.s32.totalorder %s13, 4
      %s20 = sphi 0, %s32
      %s21 = sphi 0, %s28
      %s22 = sphi 0, %s20
      %s23 = sphi 0, %s21
      %s24 = sphi 0, %s22
      %s25 = sphi 0, %s23
      %s37 = sphi 0, %s39
      %s40 = sphi 0, %s37
      %s41 = sphi 0, %s40
      %s57 = sphi 0, %s41
      %s61 = sphi 0, %s61
      %s63 = sphi 0, %s61
      %s64 = sphi 0, %s63
      %s78 = sphi 0, %s64
      %s82 = sphi 0, %s82
      %s84 = sphi 0, %s82
      %s85 = sphi 0, %s84
      %s99 = sphi 0, %s85
      %s103 = sphi 0, %s103
      %s105 = sphi 0, %s103
      %s106 = sphi 0, %s105
      %s120 = sphi 0, %s106
      %s128 = sphi 0, %s130
      %s131 = sphi 0, %s128
      %s132 = sphi 0, %s131
      %s148 = sphi 0, %s132
    $region4: #{tpu_custom_call.1} parent=1 // loop_header_branch
      %16 = sbr.rel (%p14) target = $region8
    $region5: #{tpu_custom_call.1} parent=1 // loop_body
      %s18 = ssub.s32 %s13, 1
      %s19 = ssub.s32 %s13, 2
      %s26 = sadd.s32 1, %s21
      %p27 = scmp.ge.s32.totalorder %s26, 1
      %s28 = scalar_select %p27, 0, %s26
      %s29 = sadd.s32 1, %s20
      %s30 = scalar_select %p27, %s29, %s20
      %p31 = scmp.ge.s32.totalorder %s30, 2
      %s32 = scalar_select %p31, 0, %s30
      %s33 = ssub.s32 %s20, %s32
      %s34 = ssub.s32 %s21, %s28
      %s35 = sor.u32 %s33, %s34
      %p36 = scmp.eq.s32.totalorder %s35, 0
      %s38 = sadd.s32 %s37, 1
      %s39 = scalar_select %p36, %s37, %s38
      %p42 = pneg %p36
      %p43 = scmp.eq.s32.totalorder %s13, 1
      %p44 = por %p42, %p43
      %p45 = scmp.ne.s32.totalorder %s37, %s40
      %p46 = scmp.eq.s32.totalorder %s13, 0
      %p47 = por %p45, %p46
      %p48 = scmp.ne.s32.totalorder %s37, %s40
      %p49 = scmp.eq.s32.totalorder %s18, 1
      %p50 = por %p48, %p49
      %p51 = scmp.ne.s32.totalorder %s40, %s41
      %p52 = scmp.eq.s32.totalorder %s18, 0
      %p53 = por %p51, %p52
      %p54 = scmp.ne.s32.totalorder %s40, %s41
      %p55 = scmp.eq.s32.totalorder %s19, 1
      %p56 = por %p54, %p55
      %p58 = scmp.ne.s32.totalorder %s41, %s57
      %p59 = scmp.eq.s32.totalorder %s19, 0
      %p60 = por %p58, %p59
      %s62 = sadd.s32 %s61, 1
      %p65 = scmp.eq.s32.totalorder %s13, 1
      %p66 = scmp.ne.s32.totalorder %s61, %s63
      %p67 = scmp.eq.s32.totalorder %s13, 0
      %p68 = por %p66, %p67
      %p69 = scmp.ne.s32.totalorder %s61, %s63
      %p70 = scmp.eq.s32.totalorder %s18, 1
      %p71 = por %p69, %p70
      %p72 = scmp.ne.s32.totalorder %s63, %s64
      %p73 = scmp.eq.s32.totalorder %s18, 0
      %p74 = por %p72, %p73
      %p75 = scmp.ne.s32.totalorder %s63, %s64
      %p76 = scmp.eq.s32.totalorder %s19, 1
      %p77 = por %p75, %p76
      %p79 = scmp.ne.s32.totalorder %s64, %s78
      %p80 = scmp.eq.s32.totalorder %s19, 0
      %p81 = por %p79, %p80
      %s83 = sadd.s32 %s82, 1
      %p86 = scmp.eq.s32.totalorder %s13, 1
      %p87 = scmp.ne.s32.totalorder %s82, %s84
      %p88 = scmp.eq.s32.totalorder %s13, 0
      %p89 = por %p87, %p88
      %p90 = scmp.ne.s32.totalorder %s82, %s84
      %p91 = scmp.eq.s32.totalorder %s18, 1
      %p92 = por %p90, %p91
      %p93 = scmp.ne.s32.totalorder %s84, %s85
      %p94 = scmp.eq.s32.totalorder %s18, 0
      %p95 = por %p93, %p94
      %p96 = scmp.ne.s32.totalorder %s84, %s85
      %p97 = scmp.eq.s32.totalorder %s19, 1
      %p98 = por %p96, %p97
      %p100 = scmp.ne.s32.totalorder %s85, %s99
      %p101 = scmp.eq.s32.totalorder %s19, 0
      %p102 = por %p100, %p101
      %s104 = sadd.s32 %s103, 1
      %p107 = scmp.eq.s32.totalorder %s13, 1
      %p108 = scmp.ne.s32.totalorder %s103, %s105
      %p109 = scmp.eq.s32.totalorder %s13, 0
      %p110 = por %p108, %p109
      %p111 = scmp.ne.s32.totalorder %s103, %s105
      %p112 = scmp.eq.s32.totalorder %s18, 1
      %p113 = por %p111, %p112
      %p114 = scmp.ne.s32.totalorder %s105, %s106
      %p115 = scmp.eq.s32.totalorder %s18, 0
      %p116 = por %p114, %p115
      %p117 = scmp.ne.s32.totalorder %s105, %s106
      %p118 = scmp.eq.s32.totalorder %s19, 1
      %p119 = por %p117, %p118
      %p121 = scmp.ne.s32.totalorder %s106, %s120
      %p122 = scmp.eq.s32.totalorder %s19, 0
      %p123 = por %p121, %p122
      %s124 = ssub.s32 %s20, %s32
      %s125 = ssub.s32 %s21, %s28
      %s126 = sor.u32 %s124, %s125
      %p127 = scmp.eq.s32.totalorder %s126, 0
      %s129 = sadd.s32 %s128, 1
      %s130 = scalar_select %p127, %s128, %s129
      %p133 = pneg %p127
      %p134 = scmp.eq.s32.totalorder %s13, 1
      %p135 = por %p133, %p134
      %p136 = scmp.ne.s32.totalorder %s128, %s131
      %p137 = scmp.eq.s32.totalorder %s13, 0
      %p138 = por %p136, %p137
      %p139 = scmp.ne.s32.totalorder %s128, %s131
      %p140 = scmp.eq.s32.totalorder %s18, 1
      %p141 = por %p139, %p140
      %p142 = scmp.ne.s32.totalorder %s131, %s132
      %p143 = scmp.eq.s32.totalorder %s18, 0
      %p144 = por %p142, %p143
      %p145 = scmp.ne.s32.totalorder %s131, %s132
      %p146 = scmp.eq.s32.totalorder %s19, 1
      %p147 = por %p145, %p146
      %p149 = scmp.ne.s32.totalorder %s132, %s148
      %p150 = scmp.eq.s32.totalorder %s19, 0
      %p151 = por %p149, %p150
      %p152 = scmp.le.s32.totalorder 1, %s13
      %p153 = scmp.lt.s32.totalorder %s13, 3
      %p154 = pnand %p152, %p153
      %p155 = pneg %p154
      // Predicated region
      $region9: #{tpu_custom_call.1} parent=5 // pred_check
        _
      $region10: #{tpu_custom_call.1} parent=5 // pred_check_branch
        %157 = sbr.rel (%p154) target = $region12
      $region11: #{tpu_custom_call.1} parent=5 // pred_region
        %s158 = ssub.s32 %s13, 1
        // Predicated region
        $region13: #{tpu_custom_call.1} parent=11 // pred_check
          %p159 = pneg %p74
        $region14: #{tpu_custom_call.1} parent=11 // pred_check_branch
          %161 = sbr.rel (%p159) target = $region16
        $region15: #{tpu_custom_call.1} parent=11 // pred_region
          _
        $region16: #{tpu_custom_call.1} parent=11 // pred_fallthru
          _
        // Predicated region
        $region17: #{tpu_custom_call.1} parent=11 // pred_check
          %p162 = pneg %p95
        $region18: #{tpu_custom_call.1} parent=11 // pred_check_branch
          %164 = sbr.rel (%p162) target = $region20
        $region19: #{tpu_custom_call.1} parent=11 // pred_region
          _
        $region20: #{tpu_custom_call.1} parent=11 // pred_fallthru
          _
        // Predicated region
        $region21: #{tpu_custom_call.1} parent=11 // pred_check
          %p165 = pneg %p116
        $region22: #{tpu_custom_call.1} parent=11 // pred_check_branch
          %167 = sbr.rel (%p165) target = $region24
        $region23: #{tpu_custom_call.1} parent=11 // pred_region
          _
        $region24: #{tpu_custom_call.1} parent=11 // pred_fallthru
          _
      $region12: #{tpu_custom_call.1} parent=5 // pred_fallthru
        _
      %p168 = scmp.lt.s32.totalorder %s13, 2
      // Predicated region
      $region25: #{tpu_custom_call.1} parent=5 // pred_check
        %p169 = pneg %p168
      $region26: #{tpu_custom_call.1} parent=5 // pred_check_branch
        %171 = sbr.rel (%p169) target = $region28
      $region27: #{tpu_custom_call.1} parent=5 // pred_region
        // Predicated region
        $region29: #{tpu_custom_call.1} parent=27 // pred_check
          %p172 = pneg %p47
        $region30: #{tpu_custom_call.1} parent=27 // pred_check_branch
          %174 = sbr.rel (%p172) target = $region32
        $region31: #{tpu_custom_call.1} parent=27 // pred_region
          %s175 = smul.u32 4, %s21
          %p176 = scmp.lt.s32.totalorder %s20, 1
          %s177 = scalar_select %p176, %s20, 1
          %p178 = scmp.lt.s32.totalorder %s175, 3
          %s179 = scalar_select %p178, %s175, 3
          %s180 = smul.addr %s177, 4
          %s181 = sadd.s32 %s179, %s180
          %s182 = smul.addr %s181, 4
          %s183 = scalar_lea.vmem %s0, %s182
          %s184 = smul.u32 4, %s21
        $region32: #{tpu_custom_call.1} parent=27 // pred_fallthru
          _
      $region28: #{tpu_custom_call.1} parent=5 // pred_fallthru
        _
      %p185 = scmp.le.s32.totalorder 1, %s13
      %p186 = scmp.lt.s32.totalorder %s13, 3
      %p187 = pnand %p185, %p186
      %p188 = pneg %p187
      // Predicated region
      $region33: #{tpu_custom_call.1} parent=5 // pred_check
        _
      $region34: #{tpu_custom_call.1} parent=5 // pred_check_branch
        %190 = sbr.rel (%p187) target = $region36
      $region35: #{tpu_custom_call.1} parent=5 // pred_region
        %s191 = ssub.s32 %s13, 1
        %s192 = smul.u32 4, %s23
        %p193 = scmp.lt.s32.totalorder %s22, 1
        %s194 = scalar_select %p193, %s22, 1
        %p195 = scmp.lt.s32.totalorder %s192, 3
        %s196 = scalar_select %p195, %s192, 3
        %s197 = smul.addr %s194, 4
        %s198 = sadd.s32 %s196, %s197
        %s199 = smul.addr %s198, 4
        %s200 = scalar_lea.vmem %s0, %s199
        %p201 = pneg %p53
        %p202 = pneg %p50
        %p203 = pneg %p74
        %p204 = pneg %p71
        %p205 = pneg %p95
        %p206 = pneg %p92
        %p207 = pneg %p116
        %p208 = pneg %p113
        %p209 = pneg %p144
        %p210 = pneg %p141
        %s211 = sand.u32 %s131, 1
        %s212 = scalar_lea.sflag [#allocation3], %s211
        %s213 = sand.u32 %s131, 1
        %s214 = smul.addr %s213, 256
        %s215 = scalar_lea.vmem [#allocation2], %s214
        %s216 = smul.u32 4, %s23
        %p217 = scmp.lt.s32.totalorder %s22, 1
        %s218 = scalar_select %p217, %s22, 1
        %p219 = scmp.lt.s32.totalorder %s216, 3
        %s220 = scalar_select %p219, %s216, 3
        %s221 = smul.addr %s218, 4
        %s222 = sadd.s32 %s220, %s221
        %s223 = smul.addr %s222, 4
        %s224 = scalar_lea.vmem %s0, %s223
        %s225 = smul.u32 4, %s23
        %s226 = smul.u32 4, %s23
        %v227 = vld [vmem:[%s1] sm:$0xff]
        %v228 = vld [vmem:[%s1 + $0x8] sm:$0xff]
        %v229 = vld [vmem:[%s1 + $0x10] sm:$0xff]
        %v230 = vld [vmem:[%s1 + $0x18] sm:$0xff]
        %v231 = vld [vmem:[%s1 + $0x20] sm:$0xff]
        %v232 = vld [vmem:[%s1 + $0x28] sm:$0xff]
        %v233 = vld [vmem:[%s1 + $0x30] sm:$0xff]
        %v234 = vld [vmem:[%s1 + $0x38] sm:$0xff]
        %v235 = vld [vmem:[%s224] sm:$0xff]
        %v236 = vld [vmem:[%s224 + $0x8] sm:$0xff]
        %v237 = vld [vmem:[%s2] sm:$0xff]
        %v238 = vld [vmem:[%s2 + $0x8] sm:$0xff]
        %v239 = vld [vmem:[%s2 + $0x10] sm:$0xff]
        %v240 = vld [vmem:[%s2 + $0x18] sm:$0xff]
        %v241 = vld [vmem:[%s2 + $0x20] sm:$0xff]
        %v242 = vld [vmem:[%s2 + $0x28] sm:$0xff]
        %v243 = vld [vmem:[%s2 + $0x30] sm:$0xff]
        %v244 = vld [vmem:[%s2 + $0x38] sm:$0xff]
        %246 = vset.pattern.permute.xlu0 0
        %247 = vperm.xlu0 %246, %v237
        %v248 = vpop.permute.xlu0 %247
        %251 = vset.pattern.permute.xlu0 0
        %252 = vperm.xlu0 %251, %v238
        %v253 = vpop.permute.xlu0 %252
        %256 = vset.pattern.permute.xlu0 0
        %257 = vperm.xlu0 %256, %v239
        %v258 = vpop.permute.xlu0 %257
        %261 = vset.pattern.permute.xlu0 0
        %262 = vperm.xlu0 %261, %v240
        %v263 = vpop.permute.xlu0 %262
        %266 = vset.pattern.permute.xlu0 0
        %267 = vperm.xlu0 %266, %v241
        %v268 = vpop.permute.xlu0 %267
        %271 = vset.pattern.permute.xlu0 0
        %272 = vperm.xlu0 %271, %v242
        %v273 = vpop.permute.xlu0 %272
        %276 = vset.pattern.permute.xlu0 0
        %277 = vperm.xlu0 %276, %v243
        %v278 = vpop.permute.xlu0 %277
        %281 = vset.pattern.permute.xlu0 0
        %282 = vperm.xlu0 %281, %v244
        %v283 = vpop.permute.xlu0 %282
        %v287 = vcombine.high %v235, %v235
        %v288 = vcombine.high %v236, %v236
        %vm289 = vcmask 31744
        %v291 = vsel %vm289, %v227, 0
        %v294 = vsel %vm289, %v228, 0
        %v297 = vsel %vm289, %v229, 0
        %v300 = vsel %vm289, %v230, 0
        %v303 = vsel %vm289, %v231, 0
        %v306 = vsel %vm289, %v232, 0
        %v309 = vsel %vm289, %v233, 0
        %v312 = vsel %vm289, %v234, 0
        %vm314 = vcmask 1043456
        %v315 = vsel %vm314, %v235, 0
        %v317 = vsel %vm314, %v287, 0
        %v319 = vsel %vm314, %v236, 0
        %v321 = vsel %vm314, %v288, 0
        %323 = vmatprep.subr.mxu0 %v317
        %324 = vmatpush1.msra.mxu0 %v315
        %325 = vmatprep.subr.mxu0 0.0
        %326 = vmatpush1.msra.mxu0 0.0
        %327 = vmatprep.subr.mxu0 0.0
        %328 = vmatpush1.msra.mxu0 0.0
        %329 = vmatprep.subr.mxu0 0.0
        %330 = vmatpush1.msra.mxu0 0.0
        %331 = vmatprep.subr.mxu0 0.0
        %332 = vmatpush1.msra.mxu0 0.0
        %333 = vmatprep.subr.mxu0 0.0
        %334 = vmatpush1.msra.mxu0 0.0
        %335 = vmatprep.subr.mxu0 0.0
        %336 = vmatpush1.msra.mxu0 0.0
        %337 = vmatprep.subr.mxu0 0.0
        %338 = vmatpush1.msra.mxu0 0.0
        %339 = vmatprep.subr.mxu0 0.0
        %340 = vmatpush1.msra.mxu0 0.0
        %341 = vmatprep.subr.mxu0 0.0
        %342 = vmatpush1.msra.mxu0 0.0
        %343 = vmatprep.subr.mxu0 0.0
        %344 = vmatpush1.msra.mxu0 0.0
        %345 = vmatprep.subr.mxu0 0.0
        %346 = vmatpush1.msra.mxu0 0.0
        %347 = vmatprep.subr.mxu0 0.0
        %348 = vmatpush1.msra.mxu0 0.0
        %349 = vmatprep.subr.mxu0 0.0
        %350 = vmatpush1.msra.mxu0 0.0
        %351 = vmatprep.subr.mxu0 0.0
        %352 = vmatpush1.msra.mxu0 0.0
        %353 = vmatprep.subr.mxu0 0.0
        %354 = vmatpush1.msra.mxu0 0.0
        %355 = vmatprep.subr.mxu0 0.0
        %356 = vmatpush1.msra.mxu0 0.0
        %357 = vmatprep.subr.mxu0 0.0
        %358 = vmatpush1.msra.mxu0 0.0
        %359 = vmatprep.subr.mxu0 0.0
        %360 = vmatpush1.msra.mxu0 0.0
        %361 = vmatprep.subr.mxu0 0.0
        %362 = vmatpush1.msra.mxu0 0.0
        %363 = vmatprep.subr.mxu0 0.0
        %364 = vmatpush1.msra.mxu0 0.0
        %365 = vmatprep.subr.mxu0 0.0
        %366 = vmatpush1.msra.mxu0 0.0
        %367 = vmatprep.subr.mxu0 0.0
        %368 = vmatpush1.msra.mxu0 0.0
        %369 = vmatprep.subr.mxu0 0.0
        %370 = vmatpush1.msra.mxu0 0.0
        %371 = vmatprep.subr.mxu0 0.0
        %372 = vmatpush1.msra.mxu0 0.0
        %373 = vmatprep.subr.mxu0 0.0
        %374 = vmatpush1.msra.mxu0 0.0
        %375 = vmatprep.subr.mxu0 0.0
        %376 = vmatpush1.msra.mxu0 0.0
        %377 = vmatprep.subr.mxu0 0.0
        %378 = vmatpush1.msra.mxu0 0.0
        %379 = vmatprep.subr.mxu0 0.0
        %380 = vmatpush1.msra.mxu0 0.0
        %381 = vmatprep.subr.mxu0 0.0
        %382 = vmatpush1.msra.mxu0 0.0
        %383 = vmatprep.subr.mxu0 0.0
        %384 = vmatpush1.msra.mxu0 0.0
        %385 = vmatprep.subr.mxu0 0.0
        %386 = vmatpush1.msra.mxu0 0.0
        %387 = vmatprep.mubr.f32.mxu0 0.0
        %388 = vmatmul.mubr.f32.gmra.mrb[0].mxu0 %v291
        %v389 = vpop.f32.mrb[0].mxu0
        %v390 = vadd.f32 %v248, %v389
        %v391 = vpop.f32.mrb[0].mxu0
        %v392 = vadd.f32 %v248, %v391
        %393 = vmatprep.mubr.f32.mxu0 0.0
        %394 = vmatmul.mubr.f32.gmra.mrb[0].mxu0 %v294
        %v395 = vpop.f32.mrb[0].mxu0
        %v396 = vadd.f32 %v253, %v395
        %v397 = vpop.f32.mrb[0].mxu0
        %v398 = vadd.f32 %v253, %v397
        %399 = vmatprep.mubr.f32.mxu0 0.0
        %400 = vmatmul.mubr.f32.gmra.mrb[0].mxu0 %v297
        %v401 = vpop.f32.mrb[0].mxu0
        %v402 = vadd.f32 %v258, %v401
        %v403 = vpop.f32.mrb[0].mxu0
        %v404 = vadd.f32 %v258, %v403
        %405 = vmatprep.mubr.f32.mxu0 0.0
        %406 = vmatmul.mubr.f32.gmra.mrb[0].mxu0 %v300
        %v407 = vpop.f32.mrb[0].mxu0
        %v408 = vadd.f32 %v263, %v407
        %v409 = vpop.f32.mrb[0].mxu0
        %v410 = vadd.f32 %v263, %v409
        %411 = vmatprep.mubr.f32.mxu0 0.0
        %412 = vmatmul.mubr.f32.gmra.mrb[0].mxu0 %v303
        %v413 = vpop.f32.mrb[0].mxu0
        %v414 = vadd.f32 %v268, %v413
        %v415 = vpop.f32.mrb[0].mxu0
        %v416 = vadd.f32 %v268, %v415
        %417 = vmatprep.mubr.f32.mxu0 0.0
        %418 = vmatmul.mubr.f32.gmra.mrb[0].mxu0 %v306
        %v419 = vpop.f32.mrb[0].mxu0
        %v420 = vadd.f32 %v273, %v419
        %v421 = vpop.f32.mrb[0].mxu0
        %v422 = vadd.f32 %v273, %v421
        %423 = vmatprep.mubr.f32.mxu0 0.0
        %424 = vmatmul.mubr.f32.gmra.mrb[0].mxu0 %v309
        %v425 = vpop.f32.mrb[0].mxu0
        %v426 = vadd.f32 %v278, %v425
        %v427 = vpop.f32.mrb[0].mxu0
        %v428 = vadd.f32 %v278, %v427
        %429 = vmatprep.mubr.f32.mxu0 0.0
        %430 = vmatmul.mubr.f32.gmra.mrb[0].mxu0 %v312
        %v431 = vpop.f32.mrb[0].mxu0
        %v432 = vadd.f32 %v283, %v431
        %v433 = vpop.f32.mrb[0].mxu0
        %v434 = vadd.f32 %v283, %v433
        %435 = vdwg.mxu0
        %436 = vmatprep.subr.mxu0 %v321
        %437 = vmatpush1.msra.mxu0 %v319
        %438 = vmatprep.subr.mxu0 0.0
        %439 = vmatpush1.msra.mxu0 0.0
        %440 = vmatprep.subr.mxu0 0.0
        %441 = vmatpush1.msra.mxu0 0.0
        %442 = vmatprep.subr.mxu0 0.0
        %443 = vmatpush1.msra.mxu0 0.0
        %444 = vmatprep.subr.mxu0 0.0
        %445 = vmatpush1.msra.mxu0 0.0
        %446 = vmatprep.subr.mxu0 0.0
        %447 = vmatpush1.msra.mxu0 0.0
        %448 = vmatprep.subr.mxu0 0.0
        %449 = vmatpush1.msra.mxu0 0.0
        %450 = vmatprep.subr.mxu0 0.0
        %451 = vmatpush1.msra.mxu0 0.0
        %452 = vmatprep.subr.mxu0 0.0
        %453 = vmatpush1.msra.mxu0 0.0
        %454 = vmatprep.subr.mxu0 0.0
        %455 = vmatpush1.msra.mxu0 0.0
        %456 = vmatprep.subr.mxu0 0.0
        %457 = vmatpush1.msra.mxu0 0.0
        %458 = vmatprep.subr.mxu0 0.0
        %459 = vmatpush1.msra.mxu0 0.0
        %460 = vmatprep.subr.mxu0 0.0
        %461 = vmatpush1.msra.mxu0 0.0
        %462 = vmatprep.subr.mxu0 0.0
        %463 = vmatpush1.msra.mxu0 0.0
        %464 = vmatprep.subr.mxu0 0.0
        %465 = vmatpush1.msra.mxu0 0.0
        %466 = vmatprep.subr.mxu0 0.0
        %467 = vmatpush1.msra.mxu0 0.0
        %468 = vmatprep.subr.mxu0 0.0
        %469 = vmatpush1.msra.mxu0 0.0
        %470 = vmatprep.subr.mxu0 0.0
        %471 = vmatpush1.msra.mxu0 0.0
        %472 = vmatprep.subr.mxu0 0.0
        %473 = vmatpush1.msra.mxu0 0.0
        %474 = vmatprep.subr.mxu0 0.0
        %475 = vmatpush1.msra.mxu0 0.0
        %476 = vmatprep.subr.mxu0 0.0
        %477 = vmatpush1.msra.mxu0 0.0
        %478 = vmatprep.subr.mxu0 0.0
        %479 = vmatpush1.msra.mxu0 0.0
        %480 = vmatprep.subr.mxu0 0.0
        %481 = vmatpush1.msra.mxu0 0.0
        %482 = vmatprep.subr.mxu0 0.0
        %483 = vmatpush1.msra.mxu0 0.0
        %484 = vmatprep.subr.mxu0 0.0
        %485 = vmatpush1.msra.mxu0 0.0
        %486 = vmatprep.subr.mxu0 0.0
        %487 = vmatpush1.msra.mxu0 0.0
        %488 = vmatprep.subr.mxu0 0.0
        %489 = vmatpush1.msra.mxu0 0.0
        %490 = vmatprep.subr.mxu0 0.0
        %491 = vmatpush1.msra.mxu0 0.0
        %492 = vmatprep.subr.mxu0 0.0
        %493 = vmatpush1.msra.mxu0 0.0
        %494 = vmatprep.subr.mxu0 0.0
        %495 = vmatpush1.msra.mxu0 0.0
        %496 = vmatprep.subr.mxu0 0.0
        %497 = vmatpush1.msra.mxu0 0.0
        %498 = vmatprep.subr.mxu0 0.0
        %499 = vmatpush1.msra.mxu0 0.0
        %500 = vmatprep.mubr.f32.mxu0 0.0
        %501 = vmatmul.mubr.f32.gmra.mrb[0].mxu0 %v291
        %v502 = vpop.f32.mrb[0].mxu0
        %v503 = vadd.f32 %v248, %v502
        %v504 = vpop.f32.mrb[0].mxu0
        %v505 = vadd.f32 %v248, %v504
        %506 = vmatprep.mubr.f32.mxu0 0.0
        %507 = vmatmul.mubr.f32.gmra.mrb[0].mxu0 %v294
        %v508 = vpop.f32.mrb[0].mxu0
        %v509 = vadd.f32 %v253, %v508
        %v510 = vpop.f32.mrb[0].mxu0
        %v511 = vadd.f32 %v253, %v510
        %512 = vmatprep.mubr.f32.mxu0 0.0
        %513 = vmatmul.mubr.f32.gmra.mrb[0].mxu0 %v297
        %v514 = vpop.f32.mrb[0].mxu0
        %v515 = vadd.f32 %v258, %v514
        %v516 = vpop.f32.mrb[0].mxu0
        %v517 = vadd.f32 %v258, %v516
        %518 = vmatprep.mubr.f32.mxu0 0.0
        %519 = vmatmul.mubr.f32.gmra.mrb[0].mxu0 %v300
        %v520 = vpop.f32.mrb[0].mxu0
        %v521 = vadd.f32 %v263, %v520
        %v522 = vpop.f32.mrb[0].mxu0
        %v523 = vadd.f32 %v263, %v522
        %524 = vmatprep.mubr.f32.mxu0 0.0
        %525 = vmatmul.mubr.f32.gmra.mrb[0].mxu0 %v303
        %v526 = vpop.f32.mrb[0].mxu0
        %v527 = vadd.f32 %v268, %v526
        %v528 = vpop.f32.mrb[0].mxu0
        %v529 = vadd.f32 %v268, %v528
        %530 = vmatprep.mubr.f32.mxu0 0.0
        %531 = vmatmul.mubr.f32.gmra.mrb[0].mxu0 %v306
        %v532 = vpop.f32.mrb[0].mxu0
        %v533 = vadd.f32 %v273, %v532
        %v534 = vpop.f32.mrb[0].mxu0
        %v535 = vadd.f32 %v273, %v534
        %536 = vmatprep.mubr.f32.mxu0 0.0
        %537 = vmatmul.mubr.f32.gmra.mrb[0].mxu0 %v309
        %v538 = vpop.f32.mrb[0].mxu0
        %v539 = vadd.f32 %v278, %v538
        %v540 = vpop.f32.mrb[0].mxu0
        %v541 = vadd.f32 %v278, %v540
        %542 = vmatprep.mubr.f32.mxu0 0.0
        %543 = vmatmul.mubr.f32.gmra.mrb[0].mxu0 %v312
        %v544 = vpop.f32.mrb[0].mxu0
        %v545 = vadd.f32 %v283, %v544
        %v546 = vpop.f32.mrb[0].mxu0
        %v547 = vadd.f32 %v283, %v546
        %548 = vdwg.mxu0
        %vm549 = vcmp.gt.f32.partialorder %v390, 0.0
        %vm550 = vcmp.gt.f32.partialorder %v392, 0.0
        %vm551 = vcmp.gt.f32.partialorder %v503, 0.0
        %vm552 = vcmp.gt.f32.partialorder %v505, 0.0
        %vm553 = vcmp.gt.f32.partialorder %v396, 0.0
        %vm554 = vcmp.gt.f32.partialorder %v398, 0.0
        %vm555 = vcmp.gt.f32.partialorder %v509, 0.0
        %vm556 = vcmp.gt.f32.partialorder %v511, 0.0
        %vm557 = vcmp.gt.f32.partialorder %v402, 0.0
        %vm558 = vcmp.gt.f32.partialorder %v404, 0.0
        %vm559 = vcmp.gt.f32.partialorder %v515, 0.0
        %vm560 = vcmp.gt.f32.partialorder %v517, 0.0
        %vm561 = vcmp.gt.f32.partialorder %v408, 0.0
        %vm562 = vcmp.gt.f32.partialorder %v410, 0.0
        %vm563 = vcmp.gt.f32.partialorder %v521, 0.0
        %vm564 = vcmp.gt.f32.partialorder %v523, 0.0
        %vm565 = vcmp.gt.f32.partialorder %v414, 0.0
        %vm566 = vcmp.gt.f32.partialorder %v416, 0.0
        %vm567 = vcmp.gt.f32.partialorder %v527, 0.0
        %vm568 = vcmp.gt.f32.partialorder %v529, 0.0
        %vm569 = vcmp.gt.f32.partialorder %v420, 0.0
        %vm570 = vcmp.gt.f32.partialorder %v422, 0.0
        %vm571 = vcmp.gt.f32.partialorder %v533, 0.0
        %vm572 = vcmp.gt.f32.partialorder %v535, 0.0
        %vm573 = vcmp.gt.f32.partialorder %v426, 0.0
        %vm574 = vcmp.gt.f32.partialorder %v428, 0.0
        %vm575 = vcmp.gt.f32.partialorder %v539, 0.0
        %vm576 = vcmp.gt.f32.partialorder %v541, 0.0
        %vm577 = vcmp.gt.f32.partialorder %v432, 0.0
        %vm578 = vcmp.gt.f32.partialorder %v434, 0.0
        %vm579 = vcmp.gt.f32.partialorder %v545, 0.0
        %vm580 = vcmp.gt.f32.partialorder %v547, 0.0
        %v581 = vld [vmem:[%s3] sm:$0xff]
        %v582 = vld [vmem:[%s3 + $0x8] sm:$0xff]
        %v583 = vld [vmem:[%s3 + $0x10] sm:$0xff]
        %v584 = vld [vmem:[%s3 + $0x18] sm:$0xff]
        %v585 = vld [vmem:[%s3 + $0x20] sm:$0xff]
        %v586 = vld [vmem:[%s3 + $0x28] sm:$0xff]
        %v587 = vld [vmem:[%s3 + $0x30] sm:$0xff]
        %v588 = vld [vmem:[%s3 + $0x38] sm:$0xff]
        %590 = vset.pattern.permute.xlu0 0
        %591 = vperm.xlu0 %590, %v581
        %v592 = vpop.permute.xlu0 %591
        %595 = vset.pattern.permute.xlu0 0
        %596 = vperm.xlu0 %595, %v582
        %v597 = vpop.permute.xlu0 %596
        %600 = vset.pattern.permute.xlu0 0
        %601 = vperm.xlu0 %600, %v583
        %v602 = vpop.permute.xlu0 %601
        %605 = vset.pattern.permute.xlu0 0
        %606 = vperm.xlu0 %605, %v584
        %v607 = vpop.permute.xlu0 %606
        %610 = vset.pattern.permute.xlu0 0
        %611 = vperm.xlu0 %610, %v585
        %v612 = vpop.permute.xlu0 %611
        %615 = vset.pattern.permute.xlu0 0
        %616 = vperm.xlu0 %615, %v586
        %v617 = vpop.permute.xlu0 %616
        %620 = vset.pattern.permute.xlu0 0
        %621 = vperm.xlu0 %620, %v587
        %v622 = vpop.permute.xlu0 %621
        %625 = vset.pattern.permute.xlu0 0
        %626 = vperm.xlu0 %625, %v588
        %v627 = vpop.permute.xlu0 %626
        %v629 = vmul.f32 %v592, %v390
        %v630 = vmul.f32 %v592, %v392
        %v631 = vmul.f32 %v592, %v503
        %v632 = vmul.f32 %v592, %v505
        %v633 = vmul.f32 %v597, %v396
        %v634 = vmul.f32 %v597, %v398
        %v635 = vmul.f32 %v597, %v509
        %v636 = vmul.f32 %v597, %v511
        %v637 = vmul.f32 %v602, %v402
        %v638 = vmul.f32 %v602, %v404
        %v639 = vmul.f32 %v602, %v515
        %v640 = vmul.f32 %v602, %v517
        %v641 = vmul.f32 %v607, %v408
        %v642 = vmul.f32 %v607, %v410
        %v643 = vmul.f32 %v607, %v521
        %v644 = vmul.f32 %v607, %v523
        %v645 = vmul.f32 %v612, %v414
        %v646 = vmul.f32 %v612, %v416
        %v647 = vmul.f32 %v612, %v527
        %v648 = vmul.f32 %v612, %v529
        %v649 = vmul.f32 %v617, %v420
        %v650 = vmul.f32 %v617, %v422
        %v651 = vmul.f32 %v617, %v533
        %v652 = vmul.f32 %v617, %v535
        %v653 = vmul.f32 %v622, %v426
        %v654 = vmul.f32 %v622, %v428
        %v655 = vmul.f32 %v622, %v539
        %v656 = vmul.f32 %v622, %v541
        %v657 = vmul.f32 %v627, %v432
        %v658 = vmul.f32 %v627, %v434
        %v659 = vmul.f32 %v627, %v545
        %v660 = vmul.f32 %v627, %v547
        %v661 = vsel %vm549, %v390, %v629
        %v662 = vsel %vm550, %v392, %v630
        %v663 = vsel %vm551, %v503, %v631
        %v664 = vsel %vm552, %v505, %v632
        %v665 = vsel %vm553, %v396, %v633
        %v666 = vsel %vm554, %v398, %v634
        %v667 = vsel %vm555, %v509, %v635
        %v668 = vsel %vm556, %v511, %v636
        %v669 = vsel %vm557, %v402, %v637
        %v670 = vsel %vm558, %v404, %v638
        %v671 = vsel %vm559, %v515, %v639
        %v672 = vsel %vm560, %v517, %v640
        %v673 = vsel %vm561, %v408, %v641
        %v674 = vsel %vm562, %v410, %v642
        %v675 = vsel %vm563, %v521, %v643
        %v676 = vsel %vm564, %v523, %v644
        %v677 = vsel %vm565, %v414, %v645
        %v678 = vsel %vm566, %v416, %v646
        %v679 = vsel %vm567, %v527, %v647
        %v680 = vsel %vm568, %v529, %v648
        %v681 = vsel %vm569, %v420, %v649
        %v682 = vsel %vm570, %v422, %v650
        %v683 = vsel %vm571, %v533, %v651
        %v684 = vsel %vm572, %v535, %v652
        %v685 = vsel %vm573, %v426, %v653
        %v686 = vsel %vm574, %v428, %v654
        %v687 = vsel %vm575, %v539, %v655
        %v688 = vsel %vm576, %v541, %v656
        %v689 = vsel %vm577, %v432, %v657
        %v690 = vsel %vm578, %v434, %v658
        %v691 = vsel %vm579, %v545, %v659
        %v692 = vsel %vm580, %v547, %v660
        %693 = vst [vmem:[%s215] sm:$0xff] %v661
        %694 = vst [vmem:[%s215 + $0x8] sm:$0xff] %v662
        %695 = vst [vmem:[%s215 + $0x10] sm:$0xff] %v663
        %696 = vst [vmem:[%s215 + $0x18] sm:$0xff] %v664
        %697 = vst [vmem:[%s215 + $0x20] sm:$0xff] %v665
        %698 = vst [vmem:[%s215 + $0x28] sm:$0xff] %v666
        %699 = vst [vmem:[%s215 + $0x30] sm:$0xff] %v667
        %700 = vst [vmem:[%s215 + $0x38] sm:$0xff] %v668
        %701 = vst [vmem:[%s215 + $0x40] sm:$0xff] %v669
        %702 = vst [vmem:[%s215 + $0x48] sm:$0xff] %v670
        %703 = vst [vmem:[%s215 + $0x50] sm:$0xff] %v671
        %704 = vst [vmem:[%s215 + $0x58] sm:$0xff] %v672
        %705 = vst [vmem:[%s215 + $0x60] sm:$0xff] %v673
        %706 = vst [vmem:[%s215 + $0x68] sm:$0xff] %v674
        %707 = vst [vmem:[%s215 + $0x70] sm:$0xff] %v675
        %708 = vst [vmem:[%s215 + $0x78] sm:$0xff] %v676
        %709 = vst [vmem:[%s215 + $0x80] sm:$0xff] %v677
        %710 = vst [vmem:[%s215 + $0x88] sm:$0xff] %v678
        %711 = vst [vmem:[%s215 + $0x90] sm:$0xff] %v679
        %712 = vst [vmem:[%s215 + $0x98] sm:$0xff] %v680
        %713 = vst [vmem:[%s215 + $0xa0] sm:$0xff] %v681
        %714 = vst [vmem:[%s215 + $0xa8] sm:$0xff] %v682
        %715 = vst [vmem:[%s215 + $0xb0] sm:$0xff] %v683
        %716 = vst [vmem:[%s215 + $0xb8] sm:$0xff] %v684
        %717 = vst [vmem:[%s215 + $0xc0] sm:$0xff] %v685
        %718 = vst [vmem:[%s215 + $0xc8] sm:$0xff] %v686
        %719 = vst [vmem:[%s215 + $0xd0] sm:$0xff] %v687
        %720 = vst [vmem:[%s215 + $0xd8] sm:$0xff] %v688
        %721 = vst [vmem:[%s215 + $0xe0] sm:$0xff] %v689
        %722 = vst [vmem:[%s215 + $0xe8] sm:$0xff] %v690
        %723 = vst [vmem:[%s215 + $0xf0] sm:$0xff] %v691
        %724 = vst [vmem:[%s215 + $0xf8] sm:$0xff] %v692
        %s725 = sand.u32 %s131, 1
        %s726 = scalar_lea.sflag [#allocation3], %s725
        %s727 = sand.u32 %s131, 1
        %s728 = smul.addr %s727, 256
        %s729 = scalar_lea.vmem [#allocation2], %s728
        // Predicated region
        $region37: #{tpu_custom_call.1} parent=35 // pred_check
          %p730 = pneg %p141
        $region38: #{tpu_custom_call.1} parent=35 // pred_check_branch
          %732 = sbr.rel (%p730) target = $region40
        $region39: #{tpu_custom_call.1} parent=35 // pred_region
          %s733 = smul.u32 4, %s23
          %s735 = ssub.s32 4096, 4096
          %736 = vsyncadd %s726, %s735
          %s737 = smul.addr %s22, 32
          %s738 = sadd.s32 %s733, %s737
          %s739 = smul.addr %s738, 128
          %s740 = scalar_lea.hbm %s4, %s739
          %s741 = sshll.u32 %s729, 4
          %s742 = int_to_ptr.vmem [resolvable:$true] %s741
          %747 = dma.vmem_to_hbm [thread:$0]  %s742, 4096, %s740, %s726, 512, 512, 32
        $region40: #{tpu_custom_call.1} parent=35 // pred_fallthru
          _
      $region36: #{tpu_custom_call.1} parent=5 // pred_fallthru
        _
      %p748 = scmp.le.s32.totalorder 2, %s13
      // Predicated region
      $region41: #{tpu_custom_call.1} parent=5 // pred_check
        %p749 = pneg %p748
      $region42: #{tpu_custom_call.1} parent=5 // pred_check_branch
        %751 = sbr.rel (%p749) target = $region44
      $region43: #{tpu_custom_call.1} parent=5 // pred_region
        %s752 = ssub.s32 %s13, 2
        // Predicated region
        $region45: #{tpu_custom_call.1} parent=43 // pred_check
          %p753 = pneg %p147
        $region46: #{tpu_custom_call.1} parent=43 // pred_check_branch
          %755 = sbr.rel (%p753) target = $region48
        $region47: #{tpu_custom_call.1} parent=43 // pred_region
          %s756 = sand.u32 %s132, 1
          %s757 = scalar_lea.sflag [#allocation3], %s756
          %s758 = sand.u32 %s132, 1
          %s759 = smul.addr %s758, 256
          %s760 = scalar_lea.vmem [#allocation2], %s759
          %761 = dma.done %s757, 4096
        $region48: #{tpu_custom_call.1} parent=43 // pred_fallthru
          _
      $region44: #{tpu_custom_call.1} parent=5 // pred_fallthru
        _
    $region6: #{tpu_custom_call.1} parent=1 // loop_footer
      %s17 = sadd.s32 1, %s13
    $region7: #{tpu_custom_call.1} parent=1 // loop_footer_branch
      %12 = sbr.rel target = $region3
    $region8: #{tpu_custom_call.1} parent=1 // loop_exit
      _
    %762 = vsyncpa [#allocation3], 1
    %s763 = scalar_lea.sflag [#allocation3], 1
    %764 = vsyncpa %s763, 1

</llo_original>
